<compile_context>
chip_gen: v5e
topology: v5e:2x2
jax: 0.10.0
libtpu: 0.0.40
codegen_flags: <defaults>
</compile_context>

<pallas_src>
import jax
import jax.numpy as jnp
from jax.experimental import pallas as pl
from jax.experimental.pallas import tpu as pltpu

_LANES = 384  # 128 interleaved (x, y, z) points per row


# ----------------------------- glue (plain JAX) -----------------------------
def ortho2rotation(poses):
    """poses: (B, 6) -> (B, 3, 3) rotation matrices (Gram-Schmidt, as in DGR)."""
    def normalize_vector(v):
        v_mag = jnp.sqrt((v ** 2).sum(1, keepdims=True))
        v_mag = jnp.clip(v_mag, 1e-08)
        return v / v_mag

    def cross_product(u, v):
        i = u[:, 1] * v[:, 2] - u[:, 2] * v[:, 1]
        j = u[:, 2] * v[:, 0] - u[:, 0] * v[:, 2]
        k = u[:, 0] * v[:, 1] - u[:, 1] * v[:, 0]
        return jnp.stack((i, j, k), axis=1)

    def proj_u2a(u, a):
        inner_prod = (u * a).sum(1, keepdims=True)
        norm2 = (u ** 2).sum(1, keepdims=True)
        norm2 = jnp.clip(norm2, 1e-08)
        return (inner_prod / norm2) * u

    x_raw = poses[:, 0:3]
    y_raw = poses[:, 3:6]
    x = normalize_vector(x_raw)
    y = normalize_vector(y_raw - proj_u2a(x, y_raw))
    z = cross_product(x, y)
    return jnp.stack((x, y, z), axis=2)  # columns are x, y, z


def _make_coef_table(R, t):
    """Build the (6, 384) lane-periodic coefficient table.

    Row d+2 (d in [-2, 2]) holds, for lane l with coord c = l % 3, the value
    R[c, c+d] (0 when c+d is outside [0, 2]); row 5 holds t[c].
    Then: out[l] = t[c] + sum_d coef[d+2, l] * in[l + d].
    """
    lane = jnp.arange(_LANES)
    c = lane % 3
    rows = []
    for d in range(-2, 3):
        k = c + d
        valid = (k >= 0) & (k <= 2)
        kc = jnp.clip(k, 0, 2)
        rows.append(jnp.where(valid, R[c, kc], jnp.float32(0.0)))
    rows.append(t.reshape(3)[c])
    return jnp.stack(rows, axis=0).astype(jnp.float32)  # (6, 384)


# ----------------------------- Pallas kernel --------------------------------
def _transform_kernel(coef_ref, p_ref, o_ref):
    # coef_ref: (6, 384) resident coefficient/translation table.
    # p_ref/o_ref: (TS, 384) fully dense tiles, 128 interleaved xyz per row.
    x = p_ref[...].astype(jnp.float32)          # (TS, 384)
    cf = coef_ref[...]                          # (6, 384)

    # in[l + d] == roll(x, -d) along lanes; triples never straddle a row, and
    # wherever roll wraps around the corresponding coefficient is zero.
    acc = cf[5:6, :] + cf[2:3, :] * x                        # t + (d = 0)
    acc = acc + cf[3:4, :] * jnp.roll(x, -1, axis=-1)        # d = +1
    acc = acc + cf[4:5, :] * jnp.roll(x, -2, axis=-1)        # d = +2
    acc = acc + cf[1:2, :] * jnp.roll(x, 1, axis=-1)         # d = -1
    acc = acc + cf[0:1, :] * jnp.roll(x, 2, axis=-1)         # d = -2

    o_ref[...] = acc.astype(o_ref.dtype)


# ------------------------------- wrapper -------------------------------------
def transformation_forward(points, rot6d, trans, *, ts_max=2048):
    """points: (N, 3); rot6d: (1, 6); trans: (1, 3) -> (N, 3)."""
    N = points.shape[0]
    dtype = points.dtype

    R = ortho2rotation(rot6d)[0].astype(jnp.float32)          # (3, 3)
    coef = _make_coef_table(R, trans.astype(jnp.float32))     # (6, 384)

    # Pad only up to the next multiple of 128 points (bounded waste).
    n_pad = ((N + 127) // 128) * 128
    pts = points if n_pad == N else jnp.pad(points, ((0, n_pad - N), (0, 0)))

    # Free, contiguous reshape: (n_pad, 3) -> (nr, 384).
    nr = n_pad // 128
    x2d = pts.reshape(nr, _LANES)

    # Rows per tile: multiple of 8 (or == nr when tiny), capped at ts_max,
    # and clamped so large inputs give >= 8 grid steps (megacore + pipeline).
    if nr <= 8:
        ts = nr
    else:
        ts = min(int(ts_max), max(8, ((pl.cdiv(nr, 8) + 7) // 8) * 8))
    grid = (pl.cdiv(nr, ts),)   # final block may be partial; OOB writes dropped

    out2d = pl.pallas_call(
        _transform_kernel,
        out_shape=jax.ShapeDtypeStruct((nr, _LANES), dtype),
        grid_spec=pltpu.PrefetchScalarGridSpec(
            num_scalar_prefetch=0,
            grid=grid,
            in_specs=[
                # Coefficient table: constant block index -> fetched once, resident.
                pl.BlockSpec((6, _LANES), lambda i: (0, 0)),
                # Dense interleaved point tile.
                pl.BlockSpec((ts, _LANES), lambda i: (i, 0)),
            ],
            out_specs=pl.BlockSpec((ts, _LANES), lambda i: (i, 0)),
        ),
        compiler_params=pltpu.CompilerParams(
            dimension_semantics=("parallel",),
            vmem_limit_bytes=32 * 1024 * 1024,
        ),
    )(coef, x2d)

    out = out2d.reshape(n_pad, 3)
    return out if n_pad == N else out[:N]


# ----------------------------------- main ------------------------------------
if __name__ == "__main__":
    key = jax.random.PRNGKey(0)
    k_pts, k_rot = jax.random.split(key)

    # Deterministic parameters (mirrors torch.rand(1, 6) / torch.zeros(1, 3)).
    rot6d = jax.random.uniform(k_rot, (1, 6), dtype=jnp.float32)
    trans = jnp.zeros((1, 3), dtype=jnp.float32)
    R_ref = ortho2rotation(rot6d)[0]

    # 1) N a multiple of 128 (no padding path).
    N = 256
    points = jax.random.normal(k_pts, (N, 3), dtype=jnp.float32)
    out = jax.block_until_ready(transformation_forward(points, rot6d, trans))
    ref = points @ R_ref.T + trans
    assert jnp.allclose(out, ref, atol=1e-5, rtol=1e-5)

    # 2) N not a multiple of 128 (pad-to-128 + tail slice path).
    N2 = 200
    pts2 = jax.random.normal(jax.random.PRNGKey(1), (N2, 3), dtype=jnp.float32)
    out2 = jax.block_until_ready(transformation_forward(pts2, rot6d, trans))
    ref2 = pts2 @ R_ref.T + trans
    assert jnp.allclose(out2, ref2, atol=1e-5, rtol=1e-5)

    # 3) Multi-step grid with a partial final block (nr = 36, ts = 8).
    N3 = 4500
    pts3 = jax.random.normal(jax.random.PRNGKey(2), (N3, 3), dtype=jnp.float32)
    out3 = jax.block_until_ready(transformation_forward(pts3, rot6d, trans))
    ref3 = pts3 @ R_ref.T + trans
    assert jnp.allclose(out3, ref3, atol=1e-5, rtol=1e-5)

    print("KERNEL_OK")
</pallas_src>

<mosaic_0001>
module attributes {stable_mosaic.version = 11 : i64} {
  func.func @_transform_kernel(%arg0: i32, %arg1: memref<6x384xf32, #tpu.memory_space<vmem>>, %arg2: memref<2x384xf32, #tpu.memory_space<vmem>>, %arg3: memref<2x384xf32, #tpu.memory_space<vmem>>) attributes {dimension_semantics = [#tpu.dimension_semantics<parallel>], iteration_bounds = array<i64: 1>, scalar_prefetch = 0 : i64, scratch_operands = 0 : i64, tpu.core_type = #tpu.core_type<tc>, window_params = [{pipeline_mode = #tpu.pipeline_mode<synchronous>, transform_indices = @transform_0, window_bounds = array<i64: 6, 384>}, {transform_indices = @transform_1, window_bounds = array<i64: 2, 384>}, {transform_indices = @transform_2, window_bounds = array<i64: 2, 384>}]} {
    %c0 = arith.constant 0 : index
    %c0_0 = arith.constant 0 : index
    %0 = vector.load %arg2[%c0, %c0_0] : memref<2x384xf32, #tpu.memory_space<vmem>>, vector<2x384xf32>
    %c0_1 = arith.constant 0 : index
    %c0_2 = arith.constant 0 : index
    %1 = vector.load %arg1[%c0_1, %c0_2] : memref<6x384xf32, #tpu.memory_space<vmem>>, vector<6x384xf32>
    %2 = vector.extract_strided_slice %1 {offsets = [5, 0], sizes = [1, 384], strides = [1, 1]} : vector<6x384xf32> to vector<1x384xf32>
    %3 = vector.extract_strided_slice %1 {offsets = [2, 0], sizes = [1, 384], strides = [1, 1]} : vector<6x384xf32> to vector<1x384xf32>
    %4 = vector.broadcast %3 : vector<1x384xf32> to vector<2x384xf32>
    %5 = arith.mulf %4, %0 : vector<2x384xf32>
    %6 = vector.broadcast %2 : vector<1x384xf32> to vector<2x384xf32>
    %7 = arith.addf %6, %5 : vector<2x384xf32>
    %8 = vector.extract_strided_slice %1 {offsets = [3, 0], sizes = [1, 384], strides = [1, 1]} : vector<6x384xf32> to vector<1x384xf32>
    %9 = vector.extract_strided_slice %0 {offsets = [0, 1], sizes = [2, 383], strides = [1, 1]} : vector<2x384xf32> to vector<2x383xf32>
    %10 = vector.extract_strided_slice %0 {offsets = [0, 0], sizes = [2, 1], strides = [1, 1]} : vector<2x384xf32> to vector<2x1xf32>
    %11 = tpu.concatenate %9, %10 in 1 : vector<2x383xf32>, vector<2x1xf32> -> vector<2x384xf32>
    %12 = vector.broadcast %8 : vector<1x384xf32> to vector<2x384xf32>
    %13 = arith.mulf %12, %11 : vector<2x384xf32>
    %14 = arith.addf %7, %13 : vector<2x384xf32>
    %15 = vector.extract_strided_slice %1 {offsets = [4, 0], sizes = [1, 384], strides = [1, 1]} : vector<6x384xf32> to vector<1x384xf32>
    %16 = vector.extract_strided_slice %0 {offsets = [0, 2], sizes = [2, 382], strides = [1, 1]} : vector<2x384xf32> to vector<2x382xf32>
    %17 = vector.extract_strided_slice %0 {offsets = [0, 0], sizes = [2, 2], strides = [1, 1]} : vector<2x384xf32> to vector<2x2xf32>
    %18 = tpu.concatenate %16, %17 in 1 : vector<2x382xf32>, vector<2x2xf32> -> vector<2x384xf32>
    %19 = vector.broadcast %15 : vector<1x384xf32> to vector<2x384xf32>
    %20 = arith.mulf %19, %18 : vector<2x384xf32>
    %21 = arith.addf %14, %20 : vector<2x384xf32>
    %22 = vector.extract_strided_slice %1 {offsets = [1, 0], sizes = [1, 384], strides = [1, 1]} : vector<6x384xf32> to vector<1x384xf32>
    %23 = vector.extract_strided_slice %0 {offsets = [0, 383], sizes = [2, 1], strides = [1, 1]} : vector<2x384xf32> to vector<2x1xf32>
    %24 = vector.extract_strided_slice %0 {offsets = [0, 0], sizes = [2, 383], strides = [1, 1]} : vector<2x384xf32> to vector<2x383xf32>
    %25 = tpu.concatenate %23, %24 in 1 : vector<2x1xf32>, vector<2x383xf32> -> vector<2x384xf32>
    %26 = vector.broadcast %22 : vector<1x384xf32> to vector<2x384xf32>
    %27 = arith.mulf %26, %25 : vector<2x384xf32>
    %28 = arith.addf %21, %27 : vector<2x384xf32>
    %29 = vector.extract_strided_slice %1 {offsets = [0, 0], sizes = [1, 384], strides = [1, 1]} : vector<6x384xf32> to vector<1x384xf32>
    %30 = vector.extract_strided_slice %0 {offsets = [0, 382], sizes = [2, 2], strides = [1, 1]} : vector<2x384xf32> to vector<2x2xf32>
    %31 = vector.extract_strided_slice %0 {offsets = [0, 0], sizes = [2, 382], strides = [1, 1]} : vector<2x384xf32> to vector<2x382xf32>
    %32 = tpu.concatenate %30, %31 in 1 : vector<2x2xf32>, vector<2x382xf32> -> vector<2x384xf32>
    %33 = vector.broadcast %29 : vector<1x384xf32> to vector<2x384xf32>
    %34 = arith.mulf %33, %32 : vector<2x384xf32>
    %35 = arith.addf %28, %34 : vector<2x384xf32>
    %c0_3 = arith.constant 0 : index
    %c0_4 = arith.constant 0 : index
    %36 = vector.load %arg3[%c0_3, %c0_4] : memref<2x384xf32, #tpu.memory_space<vmem>>, vector<2x384xf32>
    tpu.vector_store %arg3[%c0_3, %c0_4], %35 {strides = array<i32>} : memref<2x384xf32, #tpu.memory_space<vmem>>, vector<2x384xf32>,
    return
  }
  func.func @transform_0(%arg0: i32) -> (i32, i32) {
    %c0_i32 = arith.constant 0 : i32
    %c0_i32_0 = arith.constant 0 : i32
    %c0_i32_1 = arith.constant 0 : i32
    return %c0_i32, %c0_i32_0 : i32, i32
  }
  func.func @transform_1(%arg0: i32) -> (i32, i32) {
    %c0_i32 = arith.constant 0 : i32
    %c0_i32_0 = arith.constant 0 : i32
    return %arg0, %c0_i32 : i32, i32
  }
  func.func @transform_2(%arg0: i32) -> (i32, i32) {
    %c0_i32 = arith.constant 0 : i32
    %c0_i32_0 = arith.constant 0 : i32
    return %arg0, %c0_i32 : i32, i32
  }
}

</mosaic_0001>

<llo_original>
// kernel: tpu_custom_call.1
$region0: #{tpu_custom_call.1}
  #allocation0 [shape = 'u32[]', space=smem, size = 0x4, offset = 0x4, fixed_abs, tag = 'smem constant byte address 0x4 - core index']
  #allocation1 [shape = 'u32[72,128]{1,0:T(1,128)}', space=vmem, size = 0x9000, scoped, tag = 'internal scratch']
  %s0 = inlined_call_operand.hbm [shape: f32[6,384], index: 0, kind: input, shape index: {}]
  %s1 = inlined_call_operand.hbm [shape: f32[2,384], index: 1, kind: input, shape index: {}]
  %s2 = inlined_call_operand.hbm [shape: f32[2,384], index: 2, kind: output, shape index: {}]
  %s3 = sld [smem:[#allocation0]]
  $region26: #{tpu_custom_call.1} parent=0
    _
  %s5 = ssub.s32 1, %s3
  %s6 = scalar_select 0, %s5, %s3
  $region1: #{tpu_custom_call.1} parent=0
    #allocation2 [shape = 'u8[12288]{0}', space=vmem, size = 0x3000, scoped, tag = 'input window, operand 0, single buffered']
    #allocation3 [shape = 's32[1]{0}', space=sflag, size = 0x4, scoped, tag = 'scoped memory for tpu_custom_call.1']
    #allocation4 [shape = 's32[1]{0}', space=sflag, size = 0x4, scoped, tag = 'scoped memory for tpu_custom_call.1']
    #allocation5 [shape = 'u8[3072]{0}', space=vmem, size = 0xc00, scoped, tag = 'input window, operand 1, single buffered']
    #allocation6 [shape = 's32[1]{0}', space=sflag, size = 0x4, scoped, tag = 'scoped memory for tpu_custom_call.1']
    #allocation7 [shape = 'u8[3072]{0}', space=vmem, size = 0xc00, scoped, tag = 'output window, operand 0, single buffered']
    %7 = vsyncpa [#allocation3], 0
    %8 = vsyncpa [#allocation6], 0
    %9 = vsyncpa [#allocation4], 0
    // Predicated region
    $region2: #{tpu_custom_call.1} parent=1 // pred_check
      _
    $region3: #{tpu_custom_call.1} parent=1 // pred_check_branch
      %11 = sbr.rel (0) target = $region5
    $region4: #{tpu_custom_call.1} parent=1 // pred_region
      %13 = vsyncadd [#allocation3], 0
      %s15 = sshll.u32 %s0, 4
      %s16 = int_to_ptr.hbm [resolvable:$true] %s15
      %s17 = sshll.u32 [#allocation2], 4
      %s18 = int_to_ptr.vmem [resolvable:$true] %s17
      %20 = dma.hbm_to_vmem [thread:$0]  %s16, 384, %s18, [#allocation3]
    $region5: #{tpu_custom_call.1} parent=1 // pred_fallthru
      _
    // Predicated region
    $region6: #{tpu_custom_call.1} parent=1 // pred_check
      _
    $region7: #{tpu_custom_call.1} parent=1 // pred_check_branch
      %22 = sbr.rel (0) target = $region9
    $region8: #{tpu_custom_call.1} parent=1 // pred_region
      %24 = vsyncadd [#allocation6], 0
      %s26 = sshll.u32 %s1, 4
      %s27 = int_to_ptr.hbm [resolvable:$true] %s26
      %s28 = sshll.u32 [#allocation5], 4
      %s29 = int_to_ptr.vmem [resolvable:$true] %s28
      %31 = dma.hbm_to_vmem [thread:$0]  %s27, 96, %s29, [#allocation6]
    $region9: #{tpu_custom_call.1} parent=1 // pred_fallthru
      _
    // Predicated region
    $region10: #{tpu_custom_call.1} parent=1 // pred_check
      _
    $region11: #{tpu_custom_call.1} parent=1 // pred_check_branch
      %33 = sbr.rel (0) target = $region13
    $region12: #{tpu_custom_call.1} parent=1 // pred_region
      %35 = dma.done [#allocation3], 384
    $region13: #{tpu_custom_call.1} parent=1 // pred_fallthru
      _
    // Predicated region
    $region14: #{tpu_custom_call.1} parent=1 // pred_check
      _
    $region15: #{tpu_custom_call.1} parent=1 // pred_check_branch
      %37 = sbr.rel (0) target = $region17
    $region16: #{tpu_custom_call.1} parent=1 // pred_region
      %39 = dma.done [#allocation6], 96
    $region17: #{tpu_custom_call.1} parent=1 // pred_fallthru
      _
    %v40 = vld [vmem:[#allocation5] sm:$0x3f]
    %v41 = vld [vmem:[#allocation2] sm:$0x3f]
    %v42 = vld [vmem:[#allocation2 + $0x8] sm:$0x3f]
    %v43 = vld [vmem:[#allocation2 + $0x10] sm:$0x3f]
    %v44 = vperm.slane %v41, 2
    %v45 = vperm.slane %v42, 2
    %v46 = vperm.slane %v43, 2
    %48 = vst [vmem:[#allocation1] ss:$4 sm:$0xff] %v40
    %v49 = vld.sshfl [vmem:[#allocation1] sm:$0xff pattern:$0x73625140]
    %v50 = vld.sshfl [vmem:[#allocation1 + $0x8] sm:$0xff pattern:$0x73625140]
    %v51 = vld.sshfl [vmem:[#allocation1 + $0x10] sm:$0xff pattern:$0x73625140]
    %v55 = vmul.f32 %v44, %v49
    %v56 = vmul.f32 %v45, %v50
    %v57 = vmul.f32 %v46, %v51
    %v58 = vperm.slane %v41, 5
    %v59 = vperm.slane %v42, 5
    %v60 = vperm.slane %v43, 5
    %v61 = vadd.f32 %v58, %v55
    %v62 = vadd.f32 %v59, %v56
    %v63 = vadd.f32 %v60, %v57
    %64 = vst [vmem:[#allocation1] ss:$4 sm:$0xff] %v40
    %v65 = vld.sshfl [vmem:[#allocation1] sm:$0xff pattern:$0x73625140]
    %v66 = vld.sshfl [vmem:[#allocation1 + $0x8] sm:$0xff pattern:$0x73625140]
    %v67 = vld.sshfl [vmem:[#allocation1 + $0x10] sm:$0xff pattern:$0x73625140]
    %68 = vrot.lane.b32.xlu0 %v65, 127
    %v69 = vpop.permute.xlu0 %68
    %70 = vrot.lane.b32.xlu0 %v66, 127
    %v71 = vpop.permute.xlu0 %70
    %72 = vrot.lane.b32.xlu0 %v67, 127
    %v73 = vpop.permute.xlu0 %72
    %vm74 = vcmask 1039360
    %v75 = vsel %vm74, %v69, %v71
    %v76 = vsel %vm74, %v71, %v73
    %80 = vst [vmem:[#allocation1] ss:$4 sm:$0xff] %v40
    %v81 = vld.sshfl [vmem:[#allocation1] sm:$0xff pattern:$0x73625140]
    %82 = vrot.lane.b32.xlu0 %v81, 127
    %v83 = vpop.permute.xlu0 %82
    %v85 = vsel %vm74, %v73, %v83
    %v86 = vperm.slane %v41, 3
    %v87 = vperm.slane %v42, 3
    %v88 = vperm.slane %v43, 3
    %v89 = vmul.f32 %v86, %v75
    %v90 = vmul.f32 %v87, %v76
    %v91 = vmul.f32 %v88, %v85
    %v92 = vadd.f32 %v61, %v89
    %v93 = vadd.f32 %v62, %v90
    %v94 = vadd.f32 %v63, %v91
    %95 = vst [vmem:[#allocation1] ss:$4 sm:$0xff] %v40
    %v96 = vld.sshfl [vmem:[#allocation1] sm:$0xff pattern:$0x73625140]
    %v97 = vld.sshfl [vmem:[#allocation1 + $0x8] sm:$0xff pattern:$0x73625140]
    %v98 = vld.sshfl [vmem:[#allocation1 + $0x10] sm:$0xff pattern:$0x73625140]
    %99 = vrot.lane.b32.xlu0 %v96, 126
    %v100 = vpop.permute.xlu0 %99
    %101 = vrot.lane.b32.xlu0 %v97, 126
    %v102 = vpop.permute.xlu0 %101
    %103 = vrot.lane.b32.xlu0 %v98, 126
    %v104 = vpop.permute.xlu0 %103
    %vm105 = vcmask 1031168
    %v106 = vsel %vm105, %v100, %v102
    %v107 = vsel %vm105, %v102, %v104
    %111 = vst [vmem:[#allocation1] ss:$4 sm:$0xff] %v40
    %v112 = vld.sshfl [vmem:[#allocation1] sm:$0xff pattern:$0x73625140]
    %113 = vrot.lane.b32.xlu0 %v112, 126
    %v114 = vpop.permute.xlu0 %113
    %v116 = vsel %vm105, %v104, %v114
    %v117 = vperm.slane %v41, 4
    %v118 = vperm.slane %v42, 4
    %v119 = vperm.slane %v43, 4
    %v120 = vmul.f32 %v117, %v106
    %v121 = vmul.f32 %v118, %v107
    %v122 = vmul.f32 %v119, %v116
    %v123 = vadd.f32 %v92, %v120
    %v124 = vadd.f32 %v93, %v121
    %v125 = vadd.f32 %v94, %v122
    %126 = vst [vmem:[#allocation1] ss:$4 sm:$0xff] %v40
    %v127 = vld.sshfl [vmem:[#allocation1 + $0x10] sm:$0xff pattern:$0x73625140]
    %128 = vrot.lane.b32.xlu0 %v127, 1
    %v129 = vpop.permute.xlu0 %128
    %131 = vst [vmem:[#allocation1] ss:$4 sm:$0xff] %v40
    %v132 = vld.sshfl [vmem:[#allocation1] sm:$0xff pattern:$0x73625140]
    %v133 = vld.sshfl [vmem:[#allocation1 + $0x8] sm:$0xff pattern:$0x73625140]
    %v134 = vld.sshfl [vmem:[#allocation1 + $0x10] sm:$0xff pattern:$0x73625140]
    %135 = vrot.lane.b32.xlu0 %v132, 1
    %v136 = vpop.permute.xlu0 %135
    %137 = vrot.lane.b32.xlu0 %v133, 1
    %v138 = vpop.permute.xlu0 %137
    %139 = vrot.lane.b32.xlu0 %v134, 1
    %v140 = vpop.permute.xlu0 %139
    %vm141 = vcmask 7168
    %v142 = vsel %vm141, %v136, %v138
    %v143 = vsel %vm141, %v138, %v140
    %v147 = vsel %vm141, %v129, %v136
    %v148 = vperm.slane %v41, 1
    %v149 = vperm.slane %v42, 1
    %v150 = vperm.slane %v43, 1
    %v151 = vmul.f32 %v148, %v147
    %v152 = vmul.f32 %v149, %v142
    %v153 = vmul.f32 %v150, %v143
    %v154 = vadd.f32 %v123, %v151
    %v155 = vadd.f32 %v124, %v152
    %v156 = vadd.f32 %v125, %v153
    %157 = vst [vmem:[#allocation1] ss:$4 sm:$0xff] %v40
    %v158 = vld.sshfl [vmem:[#allocation1 + $0x10] sm:$0xff pattern:$0x73625140]
    %159 = vrot.lane.b32.xlu0 %v158, 2
    %v160 = vpop.permute.xlu0 %159
    %162 = vst [vmem:[#allocation1] ss:$4 sm:$0xff] %v40
    %v163 = vld.sshfl [vmem:[#allocation1] sm:$0xff pattern:$0x73625140]
    %v164 = vld.sshfl [vmem:[#allocation1 + $0x8] sm:$0xff pattern:$0x73625140]
    %v165 = vld.sshfl [vmem:[#allocation1 + $0x10] sm:$0xff pattern:$0x73625140]
    %166 = vrot.lane.b32.xlu0 %v163, 2
    %v167 = vpop.permute.xlu0 %166
    %168 = vrot.lane.b32.xlu0 %v164, 2
    %v169 = vpop.permute.xlu0 %168
    %170 = vrot.lane.b32.xlu0 %v165, 2
    %v171 = vpop.permute.xlu0 %170
    %vm172 = vcmask 15360
    %v173 = vsel %vm172, %v167, %v169
    %v174 = vsel %vm172, %v169, %v171
    %v178 = vsel %vm172, %v160, %v167
    %v179 = vperm.slane %v41, 0
    %v180 = vperm.slane %v42, 0
    %v181 = vperm.slane %v43, 0
    %v182 = vmul.f32 %v179, %v178
    %v183 = vmul.f32 %v180, %v173
    %v184 = vmul.f32 %v181, %v174
    %v185 = vadd.f32 %v154, %v182
    %v186 = vadd.f32 %v155, %v183
    %v187 = vadd.f32 %v156, %v184
    %v191 = vrot.slane %v186, 6
    %v192 = vrot.slane %v187, 4
    %vm193 = vcmask 1041408
    %v194 = vsel %vm193, %v185, %v191
    %vm195 = vcmask 1043456
    %v196 = vsel %vm195, %v194, %v192
    %198 = vst [vmem:[#allocation7] sm:$0x3f] %v196
    // Predicated region
    $region18: #{tpu_custom_call.1} parent=1 // pred_check
      _
    $region19: #{tpu_custom_call.1} parent=1 // pred_check_branch
      %200 = sbr.rel (0) target = $region21
    $region20: #{tpu_custom_call.1} parent=1 // pred_region
      %202 = vsyncadd [#allocation4], 0
      %s204 = sshll.u32 [#allocation7], 4
      %s205 = int_to_ptr.vmem [resolvable:$true] %s204
      %s206 = sshll.u32 %s2, 4
      %s207 = int_to_ptr.hbm [resolvable:$true] %s206
      %209 = dma.vmem_to_hbm [thread:$0]  %s205, 96, %s207, [#allocation4]
    $region21: #{tpu_custom_call.1} parent=1 // pred_fallthru
      _
    // Predicated region
    $region22: #{tpu_custom_call.1} parent=1 // pred_check
      _
    $region23: #{tpu_custom_call.1} parent=1 // pred_check_branch
      %211 = sbr.rel (0) target = $region25
    $region24: #{tpu_custom_call.1} parent=1 // pred_region
      %213 = dma.done [#allocation4], 96
    $region25: #{tpu_custom_call.1} parent=1 // pred_fallthru
      _
    %214 = vsyncpa [#allocation3], 1
    %215 = vsyncpa [#allocation6], 1
    %216 = vsyncpa [#allocation4], 1

</llo_original>
